<compile_context>
chip_gen: v7x
topology: tpu7x:2x2x1
jax: 0.10.0
libtpu: 0.0.40
codegen_flags: <defaults>
</compile_context>

<pallas_src>
import functools

import jax
import jax.numpy as jnp
from jax.experimental import pallas as pl
from jax.experimental.pallas import tpu as pltpu


ACT_BITS = 16
WEIGHT_BITS = 8
BIAS_BITS = 32

N_ACT = float(2 ** (ACT_BITS - 1) - 1)      # 32767
N_W = float(2 ** (WEIGHT_BITS - 1) - 1)     # 127
N_B = float(2 ** (BIAS_BITS - 1) - 1)       # 2^31 - 1 (approx. in f32, as in HAWQ float sim)

LANES = 128        # pad every feature dim to a full lane width
MAX_TILE_B = 512   # rows per grid step


def _round_up(x, m):
    return ((x + m - 1) // m) * m


def q_jettagger_kernel(x_ref,
                       w1_ref, ws1_ref, b1_ref,
                       w2_ref, ws2_ref, b2_ref,
                       w3_ref, ws3_ref, b3_ref,
                       w4_ref, ws4_ref, b4_ref,
                       out_ref, *, n_classes):
    x = x_ref[...].astype(jnp.float32)

    # quant_input: dynamic symmetric per-tensor activation quant -> (x_int, scale)
    absmax = jnp.maximum(jnp.abs(jnp.min(x)), jnp.abs(jnp.max(x)))
    act_scale = jnp.maximum(absmax, 1e-8) * (1.0 / N_ACT)
    x_int = jnp.clip(jnp.round(x * (1.0 / act_scale)), -N_ACT - 1.0, N_ACT)

    def quant_linear(x_int, act_scale, w_ref, ws_ref, b_ref):
        # Weights are pre-quantized (integer-valued f32) with per-channel scale.
        w_scale = ws_ref[...]                          # (1, out)
        bias_scale = w_scale * act_scale               # (1, out)
        b_int = jnp.clip(jnp.round(b_ref[...] / bias_scale), -N_B - 1.0, N_B)
        out_int = jnp.dot(x_int, w_ref[...],
                          preferred_element_type=jnp.float32) + b_int
        return out_int, bias_scale

    def relu_requant(out_int, bias_scale):
        # relu(out_int * bias_scale) == relu(out_int) * bias_scale   (bias_scale > 0)
        r_int = jnp.maximum(out_int, 0.0)
        # per-tensor absmax of the real-valued ReLU output (min is 0 after ReLU);
        # reduce per-channel first so only a (1, out) multiply is needed.
        absmax = jnp.max(jnp.max(r_int, axis=0, keepdims=True) * bias_scale)
        new_scale = jnp.maximum(absmax, 1e-8) * (1.0 / N_ACT)
        # fused dequant->requant: one per-channel multiply on the full tile
        combined = bias_scale * (1.0 / new_scale)      # (1, out)
        x_int = jnp.clip(jnp.round(r_int * combined), -N_ACT - 1.0, N_ACT)
        return x_int, new_scale

    o, bs = quant_linear(x_int, act_scale, w1_ref, ws1_ref, b1_ref)
    x_int, act_scale = relu_requant(o, bs)
    o, bs = quant_linear(x_int, act_scale, w2_ref, ws2_ref, b2_ref)
    x_int, act_scale = relu_requant(o, bs)
    o, bs = quant_linear(x_int, act_scale, w3_ref, ws3_ref, b3_ref)
    x_int, act_scale = relu_requant(o, bs)
    o, bs = quant_linear(x_int, act_scale, w4_ref, ws4_ref, b4_ref)

    logits = o * bs
    # Mask padded output lanes so the 128-wide softmax equals softmax over n_classes.
    col = jax.lax.broadcasted_iota(jnp.int32, logits.shape, dimension=1)
    logits = jnp.where(col < n_classes, logits, -1e30)
    m = jnp.max(logits, axis=-1, keepdims=True)
    e = jnp.exp(logits - m)
    inv_denom = 1.0 / jnp.sum(e, axis=-1, keepdims=True)   # (TILE_B, 1) only
    out_ref[...] = (e * inv_denom).astype(out_ref.dtype)


def prepare_params(params, lanes=LANES):
    """Pre-quantize weights (HAWQ per-output-channel symmetric) and zero-pad to lanes.

    params: list of (w, b) with w shaped (out_features, in_features) as in
    torch.nn.Linear and b shaped (out_features,).
    Returns (qparams, n_classes) where each layer entry is
    (w_int_padded (in_pad, out_pad), w_scale_padded (1, out_pad), bias_padded (1, out_pad)).
    """
    qparams = []
    for w, b in params:
        out_f, in_f = w.shape
        w_t = jnp.asarray(w, jnp.float32).T                       # (in, out)
        w_absmax = jnp.maximum(jnp.abs(jnp.min(w_t, axis=0, keepdims=True)),
                               jnp.abs(jnp.max(w_t, axis=0, keepdims=True)))
        w_scale = jnp.maximum(w_absmax, 1e-8) / N_W               # (1, out)
        w_int = jnp.clip(jnp.round(w_t / w_scale), -N_W - 1.0, N_W)

        in_pad = _round_up(in_f, lanes)
        out_pad = _round_up(out_f, lanes)
        w_int_p = jnp.zeros((in_pad, out_pad), jnp.float32).at[:in_f, :out_f].set(w_int)
        # Padded channels get scale 1.0 (their weights & bias are zero, so inert).
        ws_p = jnp.ones((1, out_pad), jnp.float32).at[:, :out_f].set(w_scale)
        b_p = jnp.zeros((1, out_pad), jnp.float32).at[:, :out_f].set(
            jnp.asarray(b, jnp.float32).reshape(1, -1))
        qparams.append((w_int_p, ws_p, b_p))
    n_classes = params[-1][0].shape[0]
    return tuple(qparams), n_classes


@functools.partial(jax.jit, static_argnames=("n_classes",))
def q_jettagger_forward(x, qparams, n_classes):
    b_rows, feat = x.shape
    in_pad = qparams[0][0].shape[0]
    out_pad = qparams[-1][0].shape[1]

    tile_b = min(MAX_TILE_B, _round_up(b_rows, 8))
    b_pad = _round_up(b_rows, tile_b)

    # Lane-dense, zero-padded activations (padding is inert for the quant stats).
    xp = jnp.zeros((b_pad, in_pad), jnp.float32).at[:b_rows, :feat].set(
        x.astype(jnp.float32))

    row_map = lambda i: (i, 0)
    resident = lambda i: (0, 0)

    args = [xp]
    in_specs = [pl.BlockSpec((tile_b, in_pad), row_map)]
    for w_int, w_scale, bias in qparams:
        args += [w_int, w_scale, bias]
        in_specs += [pl.BlockSpec(w_int.shape, resident),
                     pl.BlockSpec(w_scale.shape, resident),
                     pl.BlockSpec(bias.shape, resident)]

    out = pl.pallas_call(
        functools.partial(q_jettagger_kernel, n_classes=n_classes),
        out_shape=jax.ShapeDtypeStruct((b_pad, out_pad), jnp.float32),
        grid_spec=pl.GridSpec(
            grid=(b_pad // tile_b,),
            in_specs=in_specs,
            out_specs=pl.BlockSpec((tile_b, out_pad), row_map),
        ),
        compiler_params=pltpu.CompilerParams(
            dimension_semantics=("parallel",),
        ),
    )(*args)
    return out[:b_rows, :n_classes]


def init_linear_params(key, fan_in, fan_out):
    """Deterministic PyTorch-nn.Linear-style uniform init; (out, in) weight layout."""
    k_w, k_b = jax.random.split(key)
    bound = 1.0 / (fan_in ** 0.5)
    w = jax.random.uniform(k_w, (fan_out, fan_in), minval=-bound, maxval=bound,
                           dtype=jnp.float32)
    b = jax.random.uniform(k_b, (fan_out,), minval=-bound, maxval=bound,
                           dtype=jnp.float32)
    return w, b


if __name__ == "__main__":
    key = jax.random.PRNGKey(0)
    k_x, k1, k2, k3, k4 = jax.random.split(key, 5)

    batch = 8
    dims = [(16, 64), (64, 32), (32, 32), (32, 5)]  # JetTagger fc1..fc4 (in, out)

    params = [init_linear_params(k, fi, fo)
              for k, (fi, fo) in zip((k1, k2, k3, k4), dims)]
    qparams, n_classes = prepare_params(params)

    x = jax.random.normal(k_x, (batch, dims[0][0]), dtype=jnp.float32)

    probs = q_jettagger_forward(x, qparams, n_classes)
    probs = jax.block_until_ready(probs)

    assert probs.shape == (batch, n_classes)
    assert bool(jnp.all(jnp.isfinite(probs)))
    assert bool(jnp.allclose(jnp.sum(probs, axis=1), 1.0, atol=1e-5))

    print("KERNEL_OK")
</pallas_src>

<mosaic_0001>
module attributes {stable_mosaic.version = 11 : i64} {
  func.func @q_jettagger_kernel(%arg0: i32, %arg1: memref<8x128xf32, #tpu.memory_space<vmem>>, %arg2: memref<128x128xf32, #tpu.memory_space<vmem>>, %arg3: memref<1x128xf32, #tpu.memory_space<vmem>>, %arg4: memref<1x128xf32, #tpu.memory_space<vmem>>, %arg5: memref<128x128xf32, #tpu.memory_space<vmem>>, %arg6: memref<1x128xf32, #tpu.memory_space<vmem>>, %arg7: memref<1x128xf32, #tpu.memory_space<vmem>>, %arg8: memref<128x128xf32, #tpu.memory_space<vmem>>, %arg9: memref<1x128xf32, #tpu.memory_space<vmem>>, %arg10: memref<1x128xf32, #tpu.memory_space<vmem>>, %arg11: memref<128x128xf32, #tpu.memory_space<vmem>>, %arg12: memref<1x128xf32, #tpu.memory_space<vmem>>, %arg13: memref<1x128xf32, #tpu.memory_space<vmem>>, %arg14: memref<8x128xf32, #tpu.memory_space<vmem>>) attributes {dimension_semantics = [#tpu.dimension_semantics<parallel>], iteration_bounds = array<i64: 1>, scalar_prefetch = 0 : i64, scratch_operands = 0 : i64, tpu.core_type = #tpu.core_type<tc>, window_params = [{transform_indices = @transform_0, window_bounds = array<i64: 8, 128>}, {pipeline_mode = #tpu.pipeline_mode<synchronous>, transform_indices = @transform_1, window_bounds = array<i64: 128, 128>}, {pipeline_mode = #tpu.pipeline_mode<synchronous>, transform_indices = @transform_2, window_bounds = array<i64: 1, 128>}, {pipeline_mode = #tpu.pipeline_mode<synchronous>, transform_indices = @transform_3, window_bounds = array<i64: 1, 128>}, {pipeline_mode = #tpu.pipeline_mode<synchronous>, transform_indices = @transform_4, window_bounds = array<i64: 128, 128>}, {pipeline_mode = #tpu.pipeline_mode<synchronous>, transform_indices = @transform_5, window_bounds = array<i64: 1, 128>}, {pipeline_mode = #tpu.pipeline_mode<synchronous>, transform_indices = @transform_6, window_bounds = array<i64: 1, 128>}, {pipeline_mode = #tpu.pipeline_mode<synchronous>, transform_indices = @transform_7, window_bounds = array<i64: 128, 128>}, {pipeline_mode = #tpu.pipeline_mode<synchronous>, transform_indices = @transform_8, window_bounds = array<i64: 1, 128>}, {pipeline_mode = #tpu.pipeline_mode<synchronous>, transform_indices = @transform_9, window_bounds = array<i64: 1, 128>}, {pipeline_mode = #tpu.pipeline_mode<synchronous>, transform_indices = @transform_10, window_bounds = array<i64: 128, 128>}, {pipeline_mode = #tpu.pipeline_mode<synchronous>, transform_indices = @transform_11, window_bounds = array<i64: 1, 128>}, {pipeline_mode = #tpu.pipeline_mode<synchronous>, transform_indices = @transform_12, window_bounds = array<i64: 1, 128>}, {transform_indices = @transform_13, window_bounds = array<i64: 8, 128>}]} {
    %c0 = arith.constant 0 : index
    %c0_0 = arith.constant 0 : index
    %0 = vector.load %arg1[%c0, %c0_0] : memref<8x128xf32, #tpu.memory_space<vmem>>, vector<8x128xf32>
    %1 = vector.shape_cast %0 : vector<8x128xf32> to vector<1x8x128xf32>
    %cst = arith.constant dense<0x7F800000> : vector<1xf32>
    %2 = vector.multi_reduction <minimumf>, %1, %cst [1, 2] : vector<1x8x128xf32> to vector<1xf32>
    %3 = vector.shape_cast %2 : vector<1xf32> to vector<1x1x1xf32>
    %4 = vector.extract %3[0, 0, 0] : f32 from vector<1x1x1xf32>
    %5 = math.absf %4 : f32
    %6 = vector.shape_cast %0 : vector<8x128xf32> to vector<1x8x128xf32>
    %cst_1 = arith.constant dense<0xFF800000> : vector<1xf32>
    %7 = vector.multi_reduction <maximumf>, %6, %cst_1 [1, 2] : vector<1x8x128xf32> to vector<1xf32>
    %8 = vector.shape_cast %7 : vector<1xf32> to vector<1x1x1xf32>
    %9 = vector.extract %8[0, 0, 0] : f32 from vector<1x1x1xf32>
    %10 = math.absf %9 : f32
    %11 = arith.maximumf %5, %10 : f32
    %cst_2 = arith.constant 9.99999993E-9 : f32
    %12 = arith.maximumf %11, %cst_2 : f32
    %cst_3 = arith.constant 3.05185094E-5 : f32
    %13 = arith.mulf %12, %cst_3 : f32
    %cst_4 = arith.constant 1.000000e+00 : f32
    %14 = arith.divf %cst_4, %13 : f32
    %15 = vector.broadcast %14 : f32 to vector<8x128xf32>
    %16 = arith.mulf %0, %15 : vector<8x128xf32>
    %17 = math.roundeven %16 : vector<8x128xf32>
    %cst_5 = arith.constant -3.276800e+04 : f32
    %cst_6 = arith.constant 3.276700e+04 : f32
    %18 = vector.broadcast %cst_5 : f32 to vector<8x128xf32>
    %19 = arith.maximumf %18, %17 : vector<8x128xf32>
    %20 = vector.broadcast %cst_6 : f32 to vector<8x128xf32>
    %21 = arith.minimumf %20, %19 : vector<8x128xf32>
    %c0_7 = arith.constant 0 : index
    %c0_8 = arith.constant 0 : index
    %22 = vector.load %arg3[%c0_7, %c0_8] : memref<1x128xf32, #tpu.memory_space<vmem>>, vector<1x128xf32>
    %23 = vector.broadcast %13 : f32 to vector<1x128xf32>
    %24 = arith.mulf %22, %23 : vector<1x128xf32>
    %c0_9 = arith.constant 0 : index
    %c0_10 = arith.constant 0 : index
    %25 = vector.load %arg4[%c0_9, %c0_10] : memref<1x128xf32, #tpu.memory_space<vmem>>, vector<1x128xf32>
    %26 = arith.divf %25, %24 : vector<1x128xf32>
    %27 = math.roundeven %26 : vector<1x128xf32>
    %cst_11 = arith.constant -2.14748365E+9 : f32
    %cst_12 = arith.constant 2.14748365E+9 : f32
    %28 = vector.broadcast %cst_11 : f32 to vector<1x128xf32>
    %29 = arith.maximumf %28, %27 : vector<1x128xf32>
    %30 = vector.broadcast %cst_12 : f32 to vector<1x128xf32>
    %31 = arith.minimumf %30, %29 : vector<1x128xf32>
    %c0_13 = arith.constant 0 : index
    %c0_14 = arith.constant 0 : index
    %32 = vector.load %arg2[%c0_13, %c0_14] : memref<128x128xf32, #tpu.memory_space<vmem>>, vector<128x128xf32>
    %cst_15 = arith.constant dense<0.000000e+00> : vector<8x128xf32>
    %33 = tpu.matmul %21, %32, %cst_15 {dimension_numbers = #tpu.dot_dimension_numbers<[1], [0], [0], [1], [0, 0, 1, 1], [], []>} : vector<8x128xf32>, vector<128x128xf32>, vector<8x128xf32> -> vector<8x128xf32>
    %34 = vector.broadcast %31 : vector<1x128xf32> to vector<8x128xf32>
    %35 = arith.addf %33, %34 : vector<8x128xf32>
    %cst_16 = arith.constant 0.000000e+00 : f32
    %36 = vector.broadcast %cst_16 : f32 to vector<8x128xf32>
    %37 = arith.maximumf %35, %36 : vector<8x128xf32>
    %cst_17 = arith.constant dense<0xFF800000> : vector<128xf32>
    %38 = vector.multi_reduction <maximumf>, %37, %cst_17 [0] : vector<8x128xf32> to vector<128xf32>
    %39 = vector.shape_cast %38 : vector<128xf32> to vector<1x128xf32>
    %40 = arith.mulf %39, %24 : vector<1x128xf32>
    %41 = vector.shape_cast %40 : vector<1x128xf32> to vector<1x1x128xf32>
    %cst_18 = arith.constant dense<0xFF800000> : vector<1xf32>
    %42 = vector.multi_reduction <maximumf>, %41, %cst_18 [1, 2] : vector<1x1x128xf32> to vector<1xf32>
    %43 = vector.shape_cast %42 : vector<1xf32> to vector<1x1x1xf32>
    %44 = vector.extract %43[0, 0, 0] : f32 from vector<1x1x1xf32>
    %cst_19 = arith.constant 9.99999993E-9 : f32
    %45 = arith.maximumf %44, %cst_19 : f32
    %cst_20 = arith.constant 3.05185094E-5 : f32
    %46 = arith.mulf %45, %cst_20 : f32
    %cst_21 = arith.constant 1.000000e+00 : f32
    %47 = arith.divf %cst_21, %46 : f32
    %48 = vector.broadcast %47 : f32 to vector<1x128xf32>
    %49 = arith.mulf %24, %48 : vector<1x128xf32>
    %50 = vector.broadcast %49 : vector<1x128xf32> to vector<8x128xf32>
    %51 = arith.mulf %37, %50 : vector<8x128xf32>
    %52 = math.roundeven %51 : vector<8x128xf32>
    %cst_22 = arith.constant -3.276800e+04 : f32
    %cst_23 = arith.constant 3.276700e+04 : f32
    %53 = vector.broadcast %cst_22 : f32 to vector<8x128xf32>
    %54 = arith.maximumf %53, %52 : vector<8x128xf32>
    %55 = vector.broadcast %cst_23 : f32 to vector<8x128xf32>
    %56 = arith.minimumf %55, %54 : vector<8x128xf32>
    %c0_24 = arith.constant 0 : index
    %c0_25 = arith.constant 0 : index
    %57 = vector.load %arg6[%c0_24, %c0_25] : memref<1x128xf32, #tpu.memory_space<vmem>>, vector<1x128xf32>
    %58 = vector.broadcast %46 : f32 to vector<1x128xf32>
    %59 = arith.mulf %57, %58 : vector<1x128xf32>
    %c0_26 = arith.constant 0 : index
    %c0_27 = arith.constant 0 : index
    %60 = vector.load %arg7[%c0_26, %c0_27] : memref<1x128xf32, #tpu.memory_space<vmem>>, vector<1x128xf32>
    %61 = arith.divf %60, %59 : vector<1x128xf32>
    %62 = math.roundeven %61 : vector<1x128xf32>
    %cst_28 = arith.constant -2.14748365E+9 : f32
    %cst_29 = arith.constant 2.14748365E+9 : f32
    %63 = vector.broadcast %cst_28 : f32 to vector<1x128xf32>
    %64 = arith.maximumf %63, %62 : vector<1x128xf32>
    %65 = vector.broadcast %cst_29 : f32 to vector<1x128xf32>
    %66 = arith.minimumf %65, %64 : vector<1x128xf32>
    %c0_30 = arith.constant 0 : index
    %c0_31 = arith.constant 0 : index
    %67 = vector.load %arg5[%c0_30, %c0_31] : memref<128x128xf32, #tpu.memory_space<vmem>>, vector<128x128xf32>
    %cst_32 = arith.constant dense<0.000000e+00> : vector<8x128xf32>
    %68 = tpu.matmul %56, %67, %cst_32 {dimension_numbers = #tpu.dot_dimension_numbers<[1], [0], [0], [1], [0, 0, 1, 1], [], []>} : vector<8x128xf32>, vector<128x128xf32>, vector<8x128xf32> -> vector<8x128xf32>
    %69 = vector.broadcast %66 : vector<1x128xf32> to vector<8x128xf32>
    %70 = arith.addf %68, %69 : vector<8x128xf32>
    %cst_33 = arith.constant 0.000000e+00 : f32
    %71 = vector.broadcast %cst_33 : f32 to vector<8x128xf32>
    %72 = arith.maximumf %70, %71 : vector<8x128xf32>
    %cst_34 = arith.constant dense<0xFF800000> : vector<128xf32>
    %73 = vector.multi_reduction <maximumf>, %72, %cst_34 [0] : vector<8x128xf32> to vector<128xf32>
    %74 = vector.shape_cast %73 : vector<128xf32> to vector<1x128xf32>
    %75 = arith.mulf %74, %59 : vector<1x128xf32>
    %76 = vector.shape_cast %75 : vector<1x128xf32> to vector<1x1x128xf32>
    %cst_35 = arith.constant dense<0xFF800000> : vector<1xf32>
    %77 = vector.multi_reduction <maximumf>, %76, %cst_35 [1, 2] : vector<1x1x128xf32> to vector<1xf32>
    %78 = vector.shape_cast %77 : vector<1xf32> to vector<1x1x1xf32>
    %79 = vector.extract %78[0, 0, 0] : f32 from vector<1x1x1xf32>
    %cst_36 = arith.constant 9.99999993E-9 : f32
    %80 = arith.maximumf %79, %cst_36 : f32
    %cst_37 = arith.constant 3.05185094E-5 : f32
    %81 = arith.mulf %80, %cst_37 : f32
    %cst_38 = arith.constant 1.000000e+00 : f32
    %82 = arith.divf %cst_38, %81 : f32
    %83 = vector.broadcast %82 : f32 to vector<1x128xf32>
    %84 = arith.mulf %59, %83 : vector<1x128xf32>
    %85 = vector.broadcast %84 : vector<1x128xf32> to vector<8x128xf32>
    %86 = arith.mulf %72, %85 : vector<8x128xf32>
    %87 = math.roundeven %86 : vector<8x128xf32>
    %cst_39 = arith.constant -3.276800e+04 : f32
    %cst_40 = arith.constant 3.276700e+04 : f32
    %88 = vector.broadcast %cst_39 : f32 to vector<8x128xf32>
    %89 = arith.maximumf %88, %87 : vector<8x128xf32>
    %90 = vector.broadcast %cst_40 : f32 to vector<8x128xf32>
    %91 = arith.minimumf %90, %89 : vector<8x128xf32>
    %c0_41 = arith.constant 0 : index
    %c0_42 = arith.constant 0 : index
    %92 = vector.load %arg9[%c0_41, %c0_42] : memref<1x128xf32, #tpu.memory_space<vmem>>, vector<1x128xf32>
    %93 = vector.broadcast %81 : f32 to vector<1x128xf32>
    %94 = arith.mulf %92, %93 : vector<1x128xf32>
    %c0_43 = arith.constant 0 : index
    %c0_44 = arith.constant 0 : index
    %95 = vector.load %arg10[%c0_43, %c0_44] : memref<1x128xf32, #tpu.memory_space<vmem>>, vector<1x128xf32>
    %96 = arith.divf %95, %94 : vector<1x128xf32>
    %97 = math.roundeven %96 : vector<1x128xf32>
    %cst_45 = arith.constant -2.14748365E+9 : f32
    %cst_46 = arith.constant 2.14748365E+9 : f32
    %98 = vector.broadcast %cst_45 : f32 to vector<1x128xf32>
    %99 = arith.maximumf %98, %97 : vector<1x128xf32>
    %100 = vector.broadcast %cst_46 : f32 to vector<1x128xf32>
    %101 = arith.minimumf %100, %99 : vector<1x128xf32>
    %c0_47 = arith.constant 0 : index
    %c0_48 = arith.constant 0 : index
    %102 = vector.load %arg8[%c0_47, %c0_48] : memref<128x128xf32, #tpu.memory_space<vmem>>, vector<128x128xf32>
    %cst_49 = arith.constant dense<0.000000e+00> : vector<8x128xf32>
    %103 = tpu.matmul %91, %102, %cst_49 {dimension_numbers = #tpu.dot_dimension_numbers<[1], [0], [0], [1], [0, 0, 1, 1], [], []>} : vector<8x128xf32>, vector<128x128xf32>, vector<8x128xf32> -> vector<8x128xf32>
    %104 = vector.broadcast %101 : vector<1x128xf32> to vector<8x128xf32>
    %105 = arith.addf %103, %104 : vector<8x128xf32>
    %cst_50 = arith.constant 0.000000e+00 : f32
    %106 = vector.broadcast %cst_50 : f32 to vector<8x128xf32>
    %107 = arith.maximumf %105, %106 : vector<8x128xf32>
    %cst_51 = arith.constant dense<0xFF800000> : vector<128xf32>
    %108 = vector.multi_reduction <maximumf>, %107, %cst_51 [0] : vector<8x128xf32> to vector<128xf32>
    %109 = vector.shape_cast %108 : vector<128xf32> to vector<1x128xf32>
    %110 = arith.mulf %109, %94 : vector<1x128xf32>
    %111 = vector.shape_cast %110 : vector<1x128xf32> to vector<1x1x128xf32>
    %cst_52 = arith.constant dense<0xFF800000> : vector<1xf32>
    %112 = vector.multi_reduction <maximumf>, %111, %cst_52 [1, 2] : vector<1x1x128xf32> to vector<1xf32>
    %113 = vector.shape_cast %112 : vector<1xf32> to vector<1x1x1xf32>
    %114 = vector.extract %113[0, 0, 0] : f32 from vector<1x1x1xf32>
    %cst_53 = arith.constant 9.99999993E-9 : f32
    %115 = arith.maximumf %114, %cst_53 : f32
    %cst_54 = arith.constant 3.05185094E-5 : f32
    %116 = arith.mulf %115, %cst_54 : f32
    %cst_55 = arith.constant 1.000000e+00 : f32
    %117 = arith.divf %cst_55, %116 : f32
    %118 = vector.broadcast %117 : f32 to vector<1x128xf32>
    %119 = arith.mulf %94, %118 : vector<1x128xf32>
    %120 = vector.broadcast %119 : vector<1x128xf32> to vector<8x128xf32>
    %121 = arith.mulf %107, %120 : vector<8x128xf32>
    %122 = math.roundeven %121 : vector<8x128xf32>
    %cst_56 = arith.constant -3.276800e+04 : f32
    %cst_57 = arith.constant 3.276700e+04 : f32
    %123 = vector.broadcast %cst_56 : f32 to vector<8x128xf32>
    %124 = arith.maximumf %123, %122 : vector<8x128xf32>
    %125 = vector.broadcast %cst_57 : f32 to vector<8x128xf32>
    %126 = arith.minimumf %125, %124 : vector<8x128xf32>
    %c0_58 = arith.constant 0 : index
    %c0_59 = arith.constant 0 : index
    %127 = vector.load %arg12[%c0_58, %c0_59] : memref<1x128xf32, #tpu.memory_space<vmem>>, vector<1x128xf32>
    %128 = vector.broadcast %116 : f32 to vector<1x128xf32>
    %129 = arith.mulf %127, %128 : vector<1x128xf32>
    %c0_60 = arith.constant 0 : index
    %c0_61 = arith.constant 0 : index
    %130 = vector.load %arg13[%c0_60, %c0_61] : memref<1x128xf32, #tpu.memory_space<vmem>>, vector<1x128xf32>
    %131 = arith.divf %130, %129 : vector<1x128xf32>
    %132 = math.roundeven %131 : vector<1x128xf32>
    %cst_62 = arith.constant -2.14748365E+9 : f32
    %cst_63 = arith.constant 2.14748365E+9 : f32
    %133 = vector.broadcast %cst_62 : f32 to vector<1x128xf32>
    %134 = arith.maximumf %133, %132 : vector<1x128xf32>
    %135 = vector.broadcast %cst_63 : f32 to vector<1x128xf32>
    %136 = arith.minimumf %135, %134 : vector<1x128xf32>
    %c0_64 = arith.constant 0 : index
    %c0_65 = arith.constant 0 : index
    %137 = vector.load %arg11[%c0_64, %c0_65] : memref<128x128xf32, #tpu.memory_space<vmem>>, vector<128x128xf32>
    %cst_66 = arith.constant dense<0.000000e+00> : vector<8x128xf32>
    %138 = tpu.matmul %126, %137, %cst_66 {dimension_numbers = #tpu.dot_dimension_numbers<[1], [0], [0], [1], [0, 0, 1, 1], [], []>} : vector<8x128xf32>, vector<128x128xf32>, vector<8x128xf32> -> vector<8x128xf32>
    %139 = vector.broadcast %136 : vector<1x128xf32> to vector<8x128xf32>
    %140 = arith.addf %138, %139 : vector<8x128xf32>
    %141 = vector.broadcast %129 : vector<1x128xf32> to vector<8x128xf32>
    %142 = arith.mulf %140, %141 : vector<8x128xf32>
    %143 = tpu.iota {dimensions = array<i32: 1>} : vector<8x128xi32>
    %c5_i32 = arith.constant 5 : i32
    %144 = vector.broadcast %c5_i32 : i32 to vector<8x128xi32>
    %145 = arith.cmpi slt, %143, %144 : vector<8x128xi32>
    %cst_67 = arith.constant -1.000000e+30 : f32
    %146 = vector.broadcast %cst_67 : f32 to vector<8x128xf32>
    %147 = arith.select %145, %142, %146 : vector<8x128xi1>, vector<8x128xf32>
    %cst_68 = arith.constant dense<0xFF800000> : vector<8xf32>
    %148 = vector.multi_reduction <maximumf>, %147, %cst_68 [1] : vector<8x128xf32> to vector<8xf32>
    %149 = vector.shape_cast %148 : vector<8xf32> to vector<8x1xf32>
    %150 = vector.broadcast %149 : vector<8x1xf32> to vector<8x128xf32>
    %151 = arith.subf %147, %150 : vector<8x128xf32>
    %152 = math.exp %151 : vector<8x128xf32>
    %cst_69 = arith.constant dense<0.000000e+00> : vector<8xf32>
    %153 = vector.multi_reduction <add>, %152, %cst_69 [1] : vector<8x128xf32> to vector<8xf32>
    %154 = vector.shape_cast %153 : vector<8xf32> to vector<8x1xf32>
    %cst_70 = arith.constant 1.000000e+00 : f32
    %155 = vector.broadcast %cst_70 : f32 to vector<8x1xf32>
    %156 = arith.divf %155, %154 : vector<8x1xf32>
    %157 = vector.broadcast %156 : vector<8x1xf32> to vector<8x128xf32>
    %158 = arith.mulf %152, %157 : vector<8x128xf32>
    %c0_71 = arith.constant 0 : index
    %c0_72 = arith.constant 0 : index
    %159 = vector.load %arg14[%c0_71, %c0_72] : memref<8x128xf32, #tpu.memory_space<vmem>>, vector<8x128xf32>
    tpu.vector_store %arg14[%c0_71, %c0_72], %158 {strides = array<i32>} : memref<8x128xf32, #tpu.memory_space<vmem>>, vector<8x128xf32>,
    return
  }
  func.func @transform_0(%arg0: i32) -> (i32, i32) {
    %c0_i32 = arith.constant 0 : i32
    %c0_i32_0 = arith.constant 0 : i32
    return %arg0, %c0_i32 : i32, i32
  }
  func.func @transform_1(%arg0: i32) -> (i32, i32) {
    %c0_i32 = arith.constant 0 : i32
    %c0_i32_0 = arith.constant 0 : i32
    %c0_i32_1 = arith.constant 0 : i32
    return %c0_i32, %c0_i32_0 : i32, i32
  }
  func.func @transform_2(%arg0: i32) -> (i32, i32) {
    %c0_i32 = arith.constant 0 : i32
    %c0_i32_0 = arith.constant 0 : i32
    %c0_i32_1 = arith.constant 0 : i32
    return %c0_i32, %c0_i32_0 : i32, i32
  }
  func.func @transform_3(%arg0: i32) -> (i32, i32) {
    %c0_i32 = arith.constant 0 : i32
    %c0_i32_0 = arith.constant 0 : i32
    %c0_i32_1 = arith.constant 0 : i32
    return %c0_i32, %c0_i32_0 : i32, i32
  }
  func.func @transform_4(%arg0: i32) -> (i32, i32) {
    %c0_i32 = arith.constant 0 : i32
    %c0_i32_0 = arith.constant 0 : i32
    %c0_i32_1 = arith.constant 0 : i32
    return %c0_i32, %c0_i32_0 : i32, i32
  }
  func.func @transform_5(%arg0: i32) -> (i32, i32) {
    %c0_i32 = arith.constant 0 : i32
    %c0_i32_0 = arith.constant 0 : i32
    %c0_i32_1 = arith.constant 0 : i32
    return %c0_i32, %c0_i32_0 : i32, i32
  }
  func.func @transform_6(%arg0: i32) -> (i32, i32) {
    %c0_i32 = arith.constant 0 : i32
    %c0_i32_0 = arith.constant 0 : i32
    %c0_i32_1 = arith.constant 0 : i32
    return %c0_i32, %c0_i32_0 : i32, i32
  }
  func.func @transform_7(%arg0: i32) -> (i32, i32) {
    %c0_i32 = arith.constant 0 : i32
    %c0_i32_0 = arith.constant 0 : i32
    %c0_i32_1 = arith.constant 0 : i32
    return %c0_i32, %c0_i32_0 : i32, i32
  }
  func.func @transform_8(%arg0: i32) -> (i32, i32) {
    %c0_i32 = arith.constant 0 : i32
    %c0_i32_0 = arith.constant 0 : i32
    %c0_i32_1 = arith.constant 0 : i32
    return %c0_i32, %c0_i32_0 : i32, i32
  }
  func.func @transform_9(%arg0: i32) -> (i32, i32) {
    %c0_i32 = arith.constant 0 : i32
    %c0_i32_0 = arith.constant 0 : i32
    %c0_i32_1 = arith.constant 0 : i32
    return %c0_i32, %c0_i32_0 : i32, i32
  }
  func.func @transform_10(%arg0: i32) -> (i32, i32) {
    %c0_i32 = arith.constant 0 : i32
    %c0_i32_0 = arith.constant 0 : i32
    %c0_i32_1 = arith.constant 0 : i32
    return %c0_i32, %c0_i32_0 : i32, i32
  }
  func.func @transform_11(%arg0: i32) -> (i32, i32) {
    %c0_i32 = arith.constant 0 : i32
    %c0_i32_0 = arith.constant 0 : i32
    %c0_i32_1 = arith.constant 0 : i32
    return %c0_i32, %c0_i32_0 : i32, i32
  }
  func.func @transform_12(%arg0: i32) -> (i32, i32) {
    %c0_i32 = arith.constant 0 : i32
    %c0_i32_0 = arith.constant 0 : i32
    %c0_i32_1 = arith.constant 0 : i32
    return %c0_i32, %c0_i32_0 : i32, i32
  }
  func.func @transform_13(%arg0: i32) -> (i32, i32) {
    %c0_i32 = arith.constant 0 : i32
    %c0_i32_0 = arith.constant 0 : i32
    return %arg0, %c0_i32 : i32, i32
  }
}

</mosaic_0001>

<llo_original>
// kernel: q_jettagger_forward.1
$region0: #{q_jettagger_forward.1}
  #allocation0 [shape = 'u32[]', space=smem, size = 0x4, offset = 0x4, fixed_abs, tag = 'smem constant byte address 0x4 - core index']
  #allocation1 [shape = 'u32[144,128]{1,0:T(1,128)}', space=vmem, size = 0x12000, scoped, tag = 'internal scratch']
  %s0 = inlined_call_operand.vmem [shape: f32[8,128], index: 0, kind: input, shape index: {}]
  %s1 = inlined_call_operand.hbm [shape: f32[128,128], index: 1, kind: input, shape index: {}]
  %s2 = inlined_call_operand.vmem [shape: f32[1,128], index: 2, kind: input, shape index: {}]
  %s3 = inlined_call_operand.vmem [shape: f32[1,128], index: 3, kind: input, shape index: {}]
  %s4 = inlined_call_operand.hbm [shape: f32[128,128], index: 4, kind: input, shape index: {}]
  %s5 = inlined_call_operand.vmem [shape: f32[1,128], index: 5, kind: input, shape index: {}]
  %s6 = inlined_call_operand.vmem [shape: f32[1,128], index: 6, kind: input, shape index: {}]
  %s7 = inlined_call_operand.hbm [shape: f32[128,128], index: 7, kind: input, shape index: {}]
  %s8 = inlined_call_operand.vmem [shape: f32[1,128], index: 8, kind: input, shape index: {}]
  %s9 = inlined_call_operand.vmem [shape: f32[1,128], index: 9, kind: input, shape index: {}]
  %s10 = inlined_call_operand.hbm [shape: f32[128,128], index: 10, kind: input, shape index: {}]
  %s11 = inlined_call_operand.vmem [shape: f32[1,128], index: 11, kind: input, shape index: {}]
  %s12 = inlined_call_operand.vmem [shape: f32[1,128], index: 12, kind: input, shape index: {}]
  %s13 = inlined_call_operand.hbm [shape: f32[8,128], index: 13, kind: output, shape index: {}]
  %s14 = sld [smem:[#allocation0]]
  $region78: #{q_jettagger_forward.1} parent=0
    _
  %s16 = ssub.s32 1, %s14
  %s17 = scalar_select 0, %s16, %s14
  $region1: #{q_jettagger_forward.1} parent=0
    #allocation2 [shape = 'u8[65536]{0}', space=vmem, size = 0x10000, scoped, tag = 'input window, operand 1, single buffered']
    #allocation3 [shape = 's32[1]{0}', space=sflag, size = 0x4, scoped, tag = 'scoped memory for q_jettagger_forward.1']
    #allocation4 [shape = 's32[1]{0}', space=sflag, size = 0x4, scoped, tag = 'scoped memory for q_jettagger_forward.1']
    #allocation5 [shape = 'u8[65536]{0}', space=vmem, size = 0x10000, scoped, tag = 'input window, operand 4, single buffered']
    #allocation6 [shape = 's32[1]{0}', space=sflag, size = 0x4, scoped, tag = 'scoped memory for q_jettagger_forward.1']
    #allocation7 [shape = 'u8[65536]{0}', space=vmem, size = 0x10000, scoped, tag = 'input window, operand 7, single buffered']
    #allocation8 [shape = 'u8[65536]{0}', space=vmem, size = 0x10000, scoped, tag = 'input window, operand 10, single buffered']
    #allocation9 [shape = 's32[1]{0}', space=sflag, size = 0x4, scoped, tag = 'scoped memory for q_jettagger_forward.1']
    #allocation10 [shape = 'u8[4096]{0}', space=vmem, size = 0x1000, scoped, tag = 'output window, operand 0, single buffered']
    %18 = vsyncpa [#allocation3], 0
    %19 = vsyncpa [#allocation6], 0
    %20 = vsyncpa [#allocation9], 0
    %21 = vsyncpa [#allocation4], 0
    // Predicated region
    $region2: #{q_jettagger_forward.1} parent=1 // pred_check
      _
    $region3: #{q_jettagger_forward.1} parent=1 // pred_check_branch
      %23 = sbr.rel (0) target = $region5
    $region4: #{q_jettagger_forward.1} parent=1 // pred_region
      _
    $region5: #{q_jettagger_forward.1} parent=1 // pred_fallthru
      _
    // Predicated region
    $region6: #{q_jettagger_forward.1} parent=1 // pred_check
      _
    $region7: #{q_jettagger_forward.1} parent=1 // pred_check_branch
      %25 = sbr.rel (0) target = $region9
    $region8: #{q_jettagger_forward.1} parent=1 // pred_region
      %s27 = ssub.s32 2048, 2048
      %28 = vsyncadd [#allocation3], %s27
      %s29 = sshll.u32 [#allocation2], 4
      %s30 = int_to_ptr.vmem [resolvable:$true] %s29
      %35 = dma.hbm_to_vmem [thread:$0]  %s1, 2048, %s30, [#allocation3], 128, 128, 8
    $region9: #{q_jettagger_forward.1} parent=1 // pred_fallthru
      _
    // Predicated region
    $region10: #{q_jettagger_forward.1} parent=1 // pred_check
      _
    $region11: #{q_jettagger_forward.1} parent=1 // pred_check_branch
      %37 = sbr.rel (0) target = $region13
    $region12: #{q_jettagger_forward.1} parent=1 // pred_region
      _
    $region13: #{q_jettagger_forward.1} parent=1 // pred_fallthru
      _
    // Predicated region
    $region14: #{q_jettagger_forward.1} parent=1 // pred_check
      _
    $region15: #{q_jettagger_forward.1} parent=1 // pred_check_branch
      %39 = sbr.rel (0) target = $region17
    $region16: #{q_jettagger_forward.1} parent=1 // pred_region
      _
    $region17: #{q_jettagger_forward.1} parent=1 // pred_fallthru
      _
    // Predicated region
    $region18: #{q_jettagger_forward.1} parent=1 // pred_check
      _
    $region19: #{q_jettagger_forward.1} parent=1 // pred_check_branch
      %41 = sbr.rel (0) target = $region21
    $region20: #{q_jettagger_forward.1} parent=1 // pred_region
      %s43 = ssub.s32 2048, 2048
      %44 = vsyncadd [#allocation6], %s43
      %s45 = sshll.u32 [#allocation5], 4
      %s46 = int_to_ptr.vmem [resolvable:$true] %s45
      %51 = dma.hbm_to_vmem [thread:$0]  %s4, 2048, %s46, [#allocation6], 128, 128, 8
    $region21: #{q_jettagger_forward.1} parent=1 // pred_fallthru
      _
    // Predicated region
    $region22: #{q_jettagger_forward.1} parent=1 // pred_check
      _
    $region23: #{q_jettagger_forward.1} parent=1 // pred_check_branch
      %53 = sbr.rel (0) target = $region25
    $region24: #{q_jettagger_forward.1} parent=1 // pred_region
      _
    $region25: #{q_jettagger_forward.1} parent=1 // pred_fallthru
      _
    // Predicated region
    $region26: #{q_jettagger_forward.1} parent=1 // pred_check
      _
    $region27: #{q_jettagger_forward.1} parent=1 // pred_check_branch
      %55 = sbr.rel (0) target = $region29
    $region28: #{q_jettagger_forward.1} parent=1 // pred_region
      _
    $region29: #{q_jettagger_forward.1} parent=1 // pred_fallthru
      _
    // Predicated region
    $region30: #{q_jettagger_forward.1} parent=1 // pred_check
      _
    $region31: #{q_jettagger_forward.1} parent=1 // pred_check_branch
      %57 = sbr.rel (0) target = $region33
    $region32: #{q_jettagger_forward.1} parent=1 // pred_region
      %s59 = ssub.s32 2048, 2048
      %60 = vsyncadd [#allocation6], %s59
      %s61 = sshll.u32 [#allocation7], 4
      %s62 = int_to_ptr.vmem [resolvable:$true] %s61
      %67 = dma.hbm_to_vmem [thread:$0]  %s7, 2048, %s62, [#allocation6], 128, 128, 8
    $region33: #{q_jettagger_forward.1} parent=1 // pred_fallthru
      _
    // Predicated region
    $region34: #{q_jettagger_forward.1} parent=1 // pred_check
      _
    $region35: #{q_jettagger_forward.1} parent=1 // pred_check_branch
      %69 = sbr.rel (0) target = $region37
    $region36: #{q_jettagger_forward.1} parent=1 // pred_region
      _
    $region37: #{q_jettagger_forward.1} parent=1 // pred_fallthru
      _
    // Predicated region
    $region38: #{q_jettagger_forward.1} parent=1 // pred_check
      _
    $region39: #{q_jettagger_forward.1} parent=1 // pred_check_branch
      %71 = sbr.rel (0) target = $region41
    $region40: #{q_jettagger_forward.1} parent=1 // pred_region
      _
    $region41: #{q_jettagger_forward.1} parent=1 // pred_fallthru
      _
    // Predicated region
    $region42: #{q_jettagger_forward.1} parent=1 // pred_check
      _
    $region43: #{q_jettagger_forward.1} parent=1 // pred_check_branch
      %73 = sbr.rel (0) target = $region45
    $region44: #{q_jettagger_forward.1} parent=1 // pred_region
      %s75 = ssub.s32 2048, 2048
      %76 = vsyncadd [#allocation9], %s75
      %s77 = sshll.u32 [#allocation8], 4
      %s78 = int_to_ptr.vmem [resolvable:$true] %s77
      %83 = dma.hbm_to_vmem [thread:$0]  %s10, 2048, %s78, [#allocation9], 128, 128, 8
    $region45: #{q_jettagger_forward.1} parent=1 // pred_fallthru
      _
    // Predicated region
    $region46: #{q_jettagger_forward.1} parent=1 // pred_check
      _
    $region47: #{q_jettagger_forward.1} parent=1 // pred_check_branch
      %85 = sbr.rel (0) target = $region49
    $region48: #{q_jettagger_forward.1} parent=1 // pred_region
      _
    $region49: #{q_jettagger_forward.1} parent=1 // pred_fallthru
      _
    // Predicated region
    $region50: #{q_jettagger_forward.1} parent=1 // pred_check
      _
    $region51: #{q_jettagger_forward.1} parent=1 // pred_check_branch
      %87 = sbr.rel (0) target = $region53
    $region52: #{q_jettagger_forward.1} parent=1 // pred_region
      _
    $region53: #{q_jettagger_forward.1} parent=1 // pred_fallthru
      _
    // Predicated region
    $region54: #{q_jettagger_forward.1} parent=1 // pred_check
      _
    $region55: #{q_jettagger_forward.1} parent=1 // pred_check_branch
      %89 = sbr.rel (0) target = $region57
    $region56: #{q_jettagger_forward.1} parent=1 // pred_region
      %90 = dma.done [#allocation3], 2048
    $region57: #{q_jettagger_forward.1} parent=1 // pred_fallthru
      _
    // Predicated region
    $region58: #{q_jettagger_forward.1} parent=1 // pred_check
      _
    $region59: #{q_jettagger_forward.1} parent=1 // pred_check_branch
      %92 = sbr.rel (0) target = $region61
    $region60: #{q_jettagger_forward.1} parent=1 // pred_region
      %93 = dma.done [#allocation6], 2048
    $region61: #{q_jettagger_forward.1} parent=1 // pred_fallthru
      _
    // Predicated region
    $region62: #{q_jettagger_forward.1} parent=1 // pred_check
      _
    $region63: #{q_jettagger_forward.1} parent=1 // pred_check_branch
      %95 = sbr.rel (0) target = $region65
    $region64: #{q_jettagger_forward.1} parent=1 // pred_region
      %96 = dma.done [#allocation6], 2048
    $region65: #{q_jettagger_forward.1} parent=1 // pred_fallthru
      _
    // Predicated region
    $region66: #{q_jettagger_forward.1} parent=1 // pred_check
      _
    $region67: #{q_jettagger_forward.1} parent=1 // pred_check_branch
      %98 = sbr.rel (0) target = $region69
    $region68: #{q_jettagger_forward.1} parent=1 // pred_region
      %99 = dma.done [#allocation9], 2048
    $region69: #{q_jettagger_forward.1} parent=1 // pred_fallthru
      _
    %v100 = vld [vmem:[%s0] sm:$0xff]
    %101 = vmin.xlane.f32.xlu0 %v100
    %v102 = vpop.xlane.xlu0 %101
    %v103 = vrot.slane %v102, 4
    %v104 = vmin.f32 %v102, %v103
    %v105 = vrot.slane %v104, 2
    %v106 = vmin.f32 %v104, %v105
    %v107 = vrot.slane %v106, 1
    %v108 = vmin.f32 %v106, %v107
    %s109 = vtos %v108
    %s110 = sand.u32 2147483647, %s109
    %111 = vmax.xlane.f32.xlu0 %v100
    %v112 = vpop.xlane.xlu0 %111
    %v113 = vrot.slane %v112, 4
    %v114 = vmax.f32 %v112, %v113
    %v115 = vrot.slane %v114, 2
    %v116 = vmax.f32 %v114, %v115
    %v117 = vrot.slane %v116, 1
    %v118 = vmax.f32 %v116, %v117
    %s119 = vtos %v118
    %s120 = sand.u32 2147483647, %s119
    %s121 = smax.f32 %s110, %s120
    %s122 = smax.f32 %s121, 1e-08
    %s123 = smul.f32 %s122, 3.051851e-05
    %v124 = vstv %s123
    %v125 = vrcp.pop %v124
    %s126 = vtos %v125
    %v127 = vstv %s126
    %v128 = vmul.f32 %v100, %v127
    %v129 = vround.ne.pseudo %v128
    %v130 = vmax.f32 %v129, -32768.0
    %v131 = vmin.f32 %v130, 32767.0
    %v132 = vld [vmem:[%s2] sm:$0x1]
    %v133 = vstv %s123
    %v134 = vmul.f32 %v132, %v133
    %v135 = vld [vmem:[%s3] sm:$0x1]
    %v136 = vrcp.pop %v134
    %v137 = vmul.f32 %v135, %v136
    %v138 = vround.ne.pseudo %v137
    %v139 = vmax.f32 %v138, -2.1474836e+09
    %v140 = vmin.f32 %v139, 2.1474836e+09
    %v141 = vld [vmem:[#allocation2] sm:$0xff]
    %v142 = vld [vmem:[#allocation2 + $0x8] sm:$0xff]
    %v143 = vld [vmem:[#allocation2 + $0x10] sm:$0xff]
    %v144 = vld [vmem:[#allocation2 + $0x18] sm:$0xff]
    %v145 = vld [vmem:[#allocation2 + $0x20] sm:$0xff]
    %v146 = vld [vmem:[#allocation2 + $0x28] sm:$0xff]
    %v147 = vld [vmem:[#allocation2 + $0x30] sm:$0xff]
    %v148 = vld [vmem:[#allocation2 + $0x38] sm:$0xff]
    %v149 = vld [vmem:[#allocation2 + $0x40] sm:$0xff]
    %v150 = vld [vmem:[#allocation2 + $0x48] sm:$0xff]
    %v151 = vld [vmem:[#allocation2 + $0x50] sm:$0xff]
    %v152 = vld [vmem:[#allocation2 + $0x58] sm:$0xff]
    %v153 = vld [vmem:[#allocation2 + $0x60] sm:$0xff]
    %v154 = vld [vmem:[#allocation2 + $0x68] sm:$0xff]
    %v155 = vld [vmem:[#allocation2 + $0x70] sm:$0xff]
    %v156 = vld [vmem:[#allocation2 + $0x78] sm:$0xff]
    %v158 = vlaneseq
    %v159 = vshrl.u32 %v158, 7
    %v160 = vsub.s32 0, %v159
    %v161 = vrot.slane %v140, %v160
    %163 = vmatprep.subr.mxu0 0.0
    %164 = vmatpush1.msra.mxu0 %v141
    %165 = vmatprep.subr.mxu0 0.0
    %166 = vmatpush1.msra.mxu0 %v142
    %167 = vmatprep.subr.mxu0 0.0
    %168 = vmatpush1.msra.mxu0 %v143
    %169 = vmatprep.subr.mxu0 0.0
    %170 = vmatpush1.msra.mxu0 %v144
    %171 = vmatprep.subr.mxu0 0.0
    %172 = vmatpush1.msra.mxu0 %v145
    %173 = vmatprep.subr.mxu0 0.0
    %174 = vmatpush1.msra.mxu0 %v146
    %175 = vmatprep.subr.mxu0 0.0
    %176 = vmatpush1.msra.mxu0 %v147
    %177 = vmatprep.subr.mxu0 0.0
    %178 = vmatpush1.msra.mxu0 %v148
    %179 = vmatprep.subr.mxu0 0.0
    %180 = vmatpush1.msra.mxu0 %v149
    %181 = vmatprep.subr.mxu0 0.0
    %182 = vmatpush1.msra.mxu0 %v150
    %183 = vmatprep.subr.mxu0 0.0
    %184 = vmatpush1.msra.mxu0 %v151
    %185 = vmatprep.subr.mxu0 0.0
    %186 = vmatpush1.msra.mxu0 %v152
    %187 = vmatprep.subr.mxu0 0.0
    %188 = vmatpush1.msra.mxu0 %v153
    %189 = vmatprep.subr.mxu0 0.0
    %190 = vmatpush1.msra.mxu0 %v154
    %191 = vmatprep.subr.mxu0 0.0
    %192 = vmatpush1.msra.mxu0 %v155
    %193 = vmatprep.subr.mxu0 0.0
    %194 = vmatpush1.msra.mxu0 %v156
    %195 = vmatprep.subr.mxu0 0.0
    %196 = vmatpush1.msra.mxu0 0.0
    %197 = vmatprep.subr.mxu0 0.0
    %198 = vmatpush1.msra.mxu0 0.0
    %199 = vmatprep.subr.mxu0 0.0
    %200 = vmatpush1.msra.mxu0 0.0
    %201 = vmatprep.subr.mxu0 0.0
    %202 = vmatpush1.msra.mxu0 0.0
    %203 = vmatprep.subr.mxu0 0.0
    %204 = vmatpush1.msra.mxu0 0.0
    %205 = vmatprep.subr.mxu0 0.0
    %206 = vmatpush1.msra.mxu0 0.0
    %207 = vmatprep.subr.mxu0 0.0
    %208 = vmatpush1.msra.mxu0 0.0
    %209 = vmatprep.subr.mxu0 0.0
    %210 = vmatpush1.msra.mxu0 0.0
    %211 = vmatprep.subr.mxu0 0.0
    %212 = vmatpush1.msra.mxu0 0.0
    %213 = vmatprep.subr.mxu0 0.0
    %214 = vmatpush1.msra.mxu0 0.0
    %215 = vmatprep.subr.mxu0 0.0
    %216 = vmatpush1.msra.mxu0 0.0
    %217 = vmatprep.subr.mxu0 0.0
    %218 = vmatpush1.msra.mxu0 0.0
    %219 = vmatprep.subr.mxu0 0.0
    %220 = vmatpush1.msra.mxu0 0.0
    %221 = vmatprep.subr.mxu0 0.0
    %222 = vmatpush1.msra.mxu0 0.0
    %223 = vmatprep.subr.mxu0 0.0
    %224 = vmatpush1.msra.mxu0 0.0
    %225 = vmatprep.subr.mxu0 0.0
    %226 = vmatpush1.msra.mxu0 0.0
    %227 = vmatprep.mubr.f32.mxu0 0.0
    %228 = vmatmul.mubr.f32.gmra.mrb[0].mxu0 %v131
    %v229 = vpop.f32.mrb[0].mxu0
    %v230 = vadd.f32 %v161, %v229
    %v231 = vpop.f32.mrb[0].mxu0
    %232 = vdwg.mxu0
    %v233 = vmax.f32 %v230, 0.0
    %v234 = vrot.slane %v233, 4
    %v235 = vmax.f32 %v233, %v234
    %v236 = vrot.slane %v235, 2
    %v237 = vmax.f32 %v235, %v236
    %v238 = vrot.slane %v237, 1
    %v239 = vmax.f32 %v237, %v238
    %v240 = vmul.f32 %v239, %v134
    %vm241 = vcmask 1040384
    %v242 = vsel %vm241, %v240, -inf
    %243 = vmax.xlane.f32.xlu0 %v242
    %v244 = vpop.xlane.xlu0 %243
    %v245 = vrot.slane %v244, 4
    %v246 = vmax.f32 %v244, %v245
    %v247 = vrot.slane %v246, 2
    %v248 = vmax.f32 %v246, %v247
    %v249 = vrot.slane %v248, 1
    %v250 = vmax.f32 %v248, %v249
    %s251 = vtos %v250
    %s252 = smax.f32 %s251, 1e-08
    %s253 = smul.f32 %s252, 3.051851e-05
    %v254 = vstv %s253
    %v255 = vrcp.pop %v254
    %s256 = vtos %v255
    %v257 = vstv %s256
    %v258 = vmul.f32 %v134, %v257
    %v260 = vlaneseq
    %v261 = vshrl.u32 %v260, 7
    %v262 = vsub.s32 0, %v261
    %v263 = vrot.slane %v258, %v262
    %v265 = vmul.f32 %v233, %v263
    %v266 = vround.ne.pseudo %v265
    %v267 = vmax.f32 %v266, -32768.0
    %v268 = vmin.f32 %v267, 32767.0
    %v269 = vld [vmem:[%s5] sm:$0x1]
    %v270 = vstv %s253
    %v271 = vmul.f32 %v269, %v270
    %v272 = vld [vmem:[%s6] sm:$0x1]
    %v273 = vrcp.pop %v271
    %v274 = vmul.f32 %v272, %v273
    %v275 = vround.ne.pseudo %v274
    %v276 = vmax.f32 %v275, -2.1474836e+09
    %v277 = vmin.f32 %v276, 2.1474836e+09
    %v278 = vld [vmem:[#allocation5] sm:$0xff]
    %v279 = vld [vmem:[#allocation5 + $0x8] sm:$0xff]
    %v280 = vld [vmem:[#allocation5 + $0x10] sm:$0xff]
    %v281 = vld [vmem:[#allocation5 + $0x18] sm:$0xff]
    %v282 = vld [vmem:[#allocation5 + $0x20] sm:$0xff]
    %v283 = vld [vmem:[#allocation5 + $0x28] sm:$0xff]
    %v284 = vld [vmem:[#allocation5 + $0x30] sm:$0xff]
    %v285 = vld [vmem:[#allocation5 + $0x38] sm:$0xff]
    %v286 = vld [vmem:[#allocation5 + $0x40] sm:$0xff]
    %v287 = vld [vmem:[#allocation5 + $0x48] sm:$0xff]
    %v288 = vld [vmem:[#allocation5 + $0x50] sm:$0xff]
    %v289 = vld [vmem:[#allocation5 + $0x58] sm:$0xff]
    %v290 = vld [vmem:[#allocation5 + $0x60] sm:$0xff]
    %v291 = vld [vmem:[#allocation5 + $0x68] sm:$0xff]
    %v292 = vld [vmem:[#allocation5 + $0x70] sm:$0xff]
    %v293 = vld [vmem:[#allocation5 + $0x78] sm:$0xff]
    %v295 = vlaneseq
    %v296 = vshrl.u32 %v295, 7
    %v297 = vsub.s32 0, %v296
    %v298 = vrot.slane %v277, %v297
    %300 = vmatprep.subr.mxu0 0.0
    %301 = vmatpush1.msra.mxu0 %v278
    %302 = vmatprep.subr.mxu0 0.0
    %303 = vmatpush1.msra.mxu0 %v279
    %304 = vmatprep.subr.mxu0 0.0
    %305 = vmatpush1.msra.mxu0 %v280
    %306 = vmatprep.subr.mxu0 0.0
    %307 = vmatpush1.msra.mxu0 %v281
    %308 = vmatprep.subr.mxu0 0.0
    %309 = vmatpush1.msra.mxu0 %v282
    %310 = vmatprep.subr.mxu0 0.0
    %311 = vmatpush1.msra.mxu0 %v283
    %312 = vmatprep.subr.mxu0 0.0
    %313 = vmatpush1.msra.mxu0 %v284
    %314 = vmatprep.subr.mxu0 0.0
    %315 = vmatpush1.msra.mxu0 %v285
    %316 = vmatprep.subr.mxu0 0.0
    %317 = vmatpush1.msra.mxu0 %v286
    %318 = vmatprep.subr.mxu0 0.0
    %319 = vmatpush1.msra.mxu0 %v287
    %320 = vmatprep.subr.mxu0 0.0
    %321 = vmatpush1.msra.mxu0 %v288
    %322 = vmatprep.subr.mxu0 0.0
    %323 = vmatpush1.msra.mxu0 %v289
    %324 = vmatprep.subr.mxu0 0.0
    %325 = vmatpush1.msra.mxu0 %v290
    %326 = vmatprep.subr.mxu0 0.0
    %327 = vmatpush1.msra.mxu0 %v291
    %328 = vmatprep.subr.mxu0 0.0
    %329 = vmatpush1.msra.mxu0 %v292
    %330 = vmatprep.subr.mxu0 0.0
    %331 = vmatpush1.msra.mxu0 %v293
    %332 = vmatprep.subr.mxu0 0.0
    %333 = vmatpush1.msra.mxu0 0.0
    %334 = vmatprep.subr.mxu0 0.0
    %335 = vmatpush1.msra.mxu0 0.0
    %336 = vmatprep.subr.mxu0 0.0
    %337 = vmatpush1.msra.mxu0 0.0
    %338 = vmatprep.subr.mxu0 0.0
    %339 = vmatpush1.msra.mxu0 0.0
    %340 = vmatprep.subr.mxu0 0.0
    %341 = vmatpush1.msra.mxu0 0.0
    %342 = vmatprep.subr.mxu0 0.0
    %343 = vmatpush1.msra.mxu0 0.0
    %344 = vmatprep.subr.mxu0 0.0
    %345 = vmatpush1.msra.mxu0 0.0
    %346 = vmatprep.subr.mxu0 0.0
    %347 = vmatpush1.msra.mxu0 0.0
    %348 = vmatprep.subr.mxu0 0.0
    %349 = vmatpush1.msra.mxu0 0.0
    %350 = vmatprep.subr.mxu0 0.0
    %351 = vmatpush1.msra.mxu0 0.0
    %352 = vmatprep.subr.mxu0 0.0
    %353 = vmatpush1.msra.mxu0 0.0
    %354 = vmatprep.subr.mxu0 0.0
    %355 = vmatpush1.msra.mxu0 0.0
    %356 = vmatprep.subr.mxu0 0.0
    %357 = vmatpush1.msra.mxu0 0.0
    %358 = vmatprep.subr.mxu0 0.0
    %359 = vmatpush1.msra.mxu0 0.0
    %360 = vmatprep.subr.mxu0 0.0
    %361 = vmatpush1.msra.mxu0 0.0
    %362 = vmatprep.subr.mxu0 0.0
    %363 = vmatpush1.msra.mxu0 0.0
    %364 = vmatprep.mubr.f32.mxu0 0.0
    %365 = vmatmul.mubr.f32.gmra.mrb[0].mxu0 %v268
    %v366 = vpop.f32.mrb[0].mxu0
    %v367 = vadd.f32 %v298, %v366
    %v368 = vpop.f32.mrb[0].mxu0
    %369 = vdwg.mxu0
    %v370 = vmax.f32 %v367, 0.0
    %v371 = vrot.slane %v370, 4
    %v372 = vmax.f32 %v370, %v371
    %v373 = vrot.slane %v372, 2
    %v374 = vmax.f32 %v372, %v373
    %v375 = vrot.slane %v374, 1
    %v376 = vmax.f32 %v374, %v375
    %v377 = vmul.f32 %v376, %v271
    %v378 = vsel %vm241, %v377, -inf
    %379 = vmax.xlane.f32.xlu0 %v378
    %v380 = vpop.xlane.xlu0 %379
    %v381 = vrot.slane %v380, 4
    %v382 = vmax.f32 %v380, %v381
    %v383 = vrot.slane %v382, 2
    %v384 = vmax.f32 %v382, %v383
    %v385 = vrot.slane %v384, 1
    %v386 = vmax.f32 %v384, %v385
    %s387 = vtos %v386
    %s388 = smax.f32 %s387, 1e-08
    %s389 = smul.f32 %s388, 3.051851e-05
    %v390 = vstv %s389
    %v391 = vrcp.pop %v390
    %s392 = vtos %v391
    %v393 = vstv %s392
    %v394 = vmul.f32 %v271, %v393
    %v396 = vlaneseq
    %v397 = vshrl.u32 %v396, 7
    %v398 = vsub.s32 0, %v397
    %v399 = vrot.slane %v394, %v398
    %v401 = vmul.f32 %v370, %v399
    %v402 = vround.ne.pseudo %v401
    %v403 = vmax.f32 %v402, -32768.0
    %v404 = vmin.f32 %v403, 32767.0
    %v405 = vld [vmem:[%s8] sm:$0x1]
    %v406 = vstv %s389
    %v407 = vmul.f32 %v405, %v406
    %v408 = vld [vmem:[%s9] sm:$0x1]
    %v409 = vrcp.pop %v407
    %v410 = vmul.f32 %v408, %v409
    %v411 = vround.ne.pseudo %v410
    %v412 = vmax.f32 %v411, -2.1474836e+09
    %v413 = vmin.f32 %v412, 2.1474836e+09
    %v414 = vld [vmem:[#allocation7] sm:$0xff]
    %v415 = vld [vmem:[#allocation7 + $0x8] sm:$0xff]
    %v416 = vld [vmem:[#allocation7 + $0x10] sm:$0xff]
    %v417 = vld [vmem:[#allocation7 + $0x18] sm:$0xff]
    %v418 = vld [vmem:[#allocation7 + $0x20] sm:$0xff]
    %v419 = vld [vmem:[#allocation7 + $0x28] sm:$0xff]
    %v420 = vld [vmem:[#allocation7 + $0x30] sm:$0xff]
    %v421 = vld [vmem:[#allocation7 + $0x38] sm:$0xff]
    %v422 = vld [vmem:[#allocation7 + $0x40] sm:$0xff]
    %v423 = vld [vmem:[#allocation7 + $0x48] sm:$0xff]
    %v424 = vld [vmem:[#allocation7 + $0x50] sm:$0xff]
    %v425 = vld [vmem:[#allocation7 + $0x58] sm:$0xff]
    %v426 = vld [vmem:[#allocation7 + $0x60] sm:$0xff]
    %v427 = vld [vmem:[#allocation7 + $0x68] sm:$0xff]
    %v428 = vld [vmem:[#allocation7 + $0x70] sm:$0xff]
    %v429 = vld [vmem:[#allocation7 + $0x78] sm:$0xff]
    %v431 = vlaneseq
    %v432 = vshrl.u32 %v431, 7
    %v433 = vsub.s32 0, %v432
    %v434 = vrot.slane %v413, %v433
    %436 = vmatprep.subr.mxu0 0.0
    %437 = vmatpush1.msra.mxu0 %v414
    %438 = vmatprep.subr.mxu0 0.0
    %439 = vmatpush1.msra.mxu0 %v415
    %440 = vmatprep.subr.mxu0 0.0
    %441 = vmatpush1.msra.mxu0 %v416
    %442 = vmatprep.subr.mxu0 0.0
    %443 = vmatpush1.msra.mxu0 %v417
    %444 = vmatprep.subr.mxu0 0.0
    %445 = vmatpush1.msra.mxu0 %v418
    %446 = vmatprep.subr.mxu0 0.0
    %447 = vmatpush1.msra.mxu0 %v419
    %448 = vmatprep.subr.mxu0 0.0
    %449 = vmatpush1.msra.mxu0 %v420
    %450 = vmatprep.subr.mxu0 0.0
    %451 = vmatpush1.msra.mxu0 %v421
    %452 = vmatprep.subr.mxu0 0.0
    %453 = vmatpush1.msra.mxu0 %v422
    %454 = vmatprep.subr.mxu0 0.0
    %455 = vmatpush1.msra.mxu0 %v423
    %456 = vmatprep.subr.mxu0 0.0
    %457 = vmatpush1.msra.mxu0 %v424
    %458 = vmatprep.subr.mxu0 0.0
    %459 = vmatpush1.msra.mxu0 %v425
    %460 = vmatprep.subr.mxu0 0.0
    %461 = vmatpush1.msra.mxu0 %v426
    %462 = vmatprep.subr.mxu0 0.0
    %463 = vmatpush1.msra.mxu0 %v427
    %464 = vmatprep.subr.mxu0 0.0
    %465 = vmatpush1.msra.mxu0 %v428
    %466 = vmatprep.subr.mxu0 0.0
    %467 = vmatpush1.msra.mxu0 %v429
    %468 = vmatprep.subr.mxu0 0.0
    %469 = vmatpush1.msra.mxu0 0.0
    %470 = vmatprep.subr.mxu0 0.0
    %471 = vmatpush1.msra.mxu0 0.0
    %472 = vmatprep.subr.mxu0 0.0
    %473 = vmatpush1.msra.mxu0 0.0
    %474 = vmatprep.subr.mxu0 0.0
    %475 = vmatpush1.msra.mxu0 0.0
    %476 = vmatprep.subr.mxu0 0.0
    %477 = vmatpush1.msra.mxu0 0.0
    %478 = vmatprep.subr.mxu0 0.0
    %479 = vmatpush1.msra.mxu0 0.0
    %480 = vmatprep.subr.mxu0 0.0
    %481 = vmatpush1.msra.mxu0 0.0
    %482 = vmatprep.subr.mxu0 0.0
    %483 = vmatpush1.msra.mxu0 0.0
    %484 = vmatprep.subr.mxu0 0.0
    %485 = vmatpush1.msra.mxu0 0.0
    %486 = vmatprep.subr.mxu0 0.0
    %487 = vmatpush1.msra.mxu0 0.0
    %488 = vmatprep.subr.mxu0 0.0
    %489 = vmatpush1.msra.mxu0 0.0
    %490 = vmatprep.subr.mxu0 0.0
    %491 = vmatpush1.msra.mxu0 0.0
    %492 = vmatprep.subr.mxu0 0.0
    %493 = vmatpush1.msra.mxu0 0.0
    %494 = vmatprep.subr.mxu0 0.0
    %495 = vmatpush1.msra.mxu0 0.0
    %496 = vmatprep.subr.mxu0 0.0
    %497 = vmatpush1.msra.mxu0 0.0
    %498 = vmatprep.subr.mxu0 0.0
    %499 = vmatpush1.msra.mxu0 0.0
    %500 = vmatprep.mubr.f32.mxu0 0.0
    %501 = vmatmul.mubr.f32.gmra.mrb[0].mxu0 %v404
    %v502 = vpop.f32.mrb[0].mxu0
    %v503 = vadd.f32 %v434, %v502
    %v504 = vpop.f32.mrb[0].mxu0
    %505 = vdwg.mxu0
    %v506 = vmax.f32 %v503, 0.0
    %v507 = vrot.slane %v506, 4
    %v508 = vmax.f32 %v506, %v507
    %v509 = vrot.slane %v508, 2
    %v510 = vmax.f32 %v508, %v509
    %v511 = vrot.slane %v510, 1
    %v512 = vmax.f32 %v510, %v511
    %v513 = vmul.f32 %v512, %v407
    %v514 = vsel %vm241, %v513, -inf
    %515 = vmax.xlane.f32.xlu0 %v514
    %v516 = vpop.xlane.xlu0 %515
    %v517 = vrot.slane %v516, 4
    %v518 = vmax.f32 %v516, %v517
    %v519 = vrot.slane %v518, 2
    %v520 = vmax.f32 %v518, %v519
    %v521 = vrot.slane %v520, 1
    %v522 = vmax.f32 %v520, %v521
    %s523 = vtos %v522
    %s524 = smax.f32 %s523, 1e-08
    %s525 = smul.f32 %s524, 3.051851e-05
    %v526 = vstv %s525
    %v527 = vrcp.pop %v526
    %s528 = vtos %v527
    %v529 = vstv %s528
    %v530 = vmul.f32 %v407, %v529
    %v532 = vlaneseq
    %v533 = vshrl.u32 %v532, 7
    %v534 = vsub.s32 0, %v533
    %v535 = vrot.slane %v530, %v534
    %v537 = vmul.f32 %v506, %v535
    %v538 = vround.ne.pseudo %v537
    %v539 = vmax.f32 %v538, -32768.0
    %v540 = vmin.f32 %v539, 32767.0
    %v541 = vld [vmem:[%s11] sm:$0x1]
    %v542 = vstv %s525
    %v543 = vmul.f32 %v541, %v542
    %v544 = vld [vmem:[%s12] sm:$0x1]
    %v545 = vrcp.pop %v543
    %v546 = vmul.f32 %v544, %v545
    %v547 = vround.ne.pseudo %v546
    %v548 = vmax.f32 %v547, -2.1474836e+09
    %v549 = vmin.f32 %v548, 2.1474836e+09
    %v550 = vld [vmem:[#allocation8] sm:$0xff]
    %v551 = vld [vmem:[#allocation8 + $0x8] sm:$0xff]
    %v552 = vld [vmem:[#allocation8 + $0x10] sm:$0xff]
    %v553 = vld [vmem:[#allocation8 + $0x18] sm:$0xff]
    %v554 = vld [vmem:[#allocation8 + $0x20] sm:$0xff]
    %v555 = vld [vmem:[#allocation8 + $0x28] sm:$0xff]
    %v556 = vld [vmem:[#allocation8 + $0x30] sm:$0xff]
    %v557 = vld [vmem:[#allocation8 + $0x38] sm:$0xff]
    %v558 = vld [vmem:[#allocation8 + $0x40] sm:$0xff]
    %v559 = vld [vmem:[#allocation8 + $0x48] sm:$0xff]
    %v560 = vld [vmem:[#allocation8 + $0x50] sm:$0xff]
    %v561 = vld [vmem:[#allocation8 + $0x58] sm:$0xff]
    %v562 = vld [vmem:[#allocation8 + $0x60] sm:$0xff]
    %v563 = vld [vmem:[#allocation8 + $0x68] sm:$0xff]
    %v564 = vld [vmem:[#allocation8 + $0x70] sm:$0xff]
    %v565 = vld [vmem:[#allocation8 + $0x78] sm:$0xff]
    %v567 = vlaneseq
    %v568 = vshrl.u32 %v567, 7
    %v569 = vsub.s32 0, %v568
    %v570 = vrot.slane %v549, %v569
    %572 = vmatprep.subr.mxu0 0.0
    %573 = vmatpush1.msra.mxu0 %v550
    %574 = vmatprep.subr.mxu0 0.0
    %575 = vmatpush1.msra.mxu0 %v551
    %576 = vmatprep.subr.mxu0 0.0
    %577 = vmatpush1.msra.mxu0 %v552
    %578 = vmatprep.subr.mxu0 0.0
    %579 = vmatpush1.msra.mxu0 %v553
    %580 = vmatprep.subr.mxu0 0.0
    %581 = vmatpush1.msra.mxu0 %v554
    %582 = vmatprep.subr.mxu0 0.0
    %583 = vmatpush1.msra.mxu0 %v555
    %584 = vmatprep.subr.mxu0 0.0
    %585 = vmatpush1.msra.mxu0 %v556
    %586 = vmatprep.subr.mxu0 0.0
    %587 = vmatpush1.msra.mxu0 %v557
    %588 = vmatprep.subr.mxu0 0.0
    %589 = vmatpush1.msra.mxu0 %v558
    %590 = vmatprep.subr.mxu0 0.0
    %591 = vmatpush1.msra.mxu0 %v559
    %592 = vmatprep.subr.mxu0 0.0
    %593 = vmatpush1.msra.mxu0 %v560
    %594 = vmatprep.subr.mxu0 0.0
    %595 = vmatpush1.msra.mxu0 %v561
    %596 = vmatprep.subr.mxu0 0.0
    %597 = vmatpush1.msra.mxu0 %v562
    %598 = vmatprep.subr.mxu0 0.0
    %599 = vmatpush1.msra.mxu0 %v563
    %600 = vmatprep.subr.mxu0 0.0
    %601 = vmatpush1.msra.mxu0 %v564
    %602 = vmatprep.subr.mxu0 0.0
    %603 = vmatpush1.msra.mxu0 %v565
    %604 = vmatprep.subr.mxu0 0.0
    %605 = vmatpush1.msra.mxu0 0.0
    %606 = vmatprep.subr.mxu0 0.0
    %607 = vmatpush1.msra.mxu0 0.0
    %608 = vmatprep.subr.mxu0 0.0
    %609 = vmatpush1.msra.mxu0 0.0
    %610 = vmatprep.subr.mxu0 0.0
    %611 = vmatpush1.msra.mxu0 0.0
    %612 = vmatprep.subr.mxu0 0.0
    %613 = vmatpush1.msra.mxu0 0.0
    %614 = vmatprep.subr.mxu0 0.0
    %615 = vmatpush1.msra.mxu0 0.0
    %616 = vmatprep.subr.mxu0 0.0
    %617 = vmatpush1.msra.mxu0 0.0
    %618 = vmatprep.subr.mxu0 0.0
    %619 = vmatpush1.msra.mxu0 0.0
    %620 = vmatprep.subr.mxu0 0.0
    %621 = vmatpush1.msra.mxu0 0.0
    %622 = vmatprep.subr.mxu0 0.0
    %623 = vmatpush1.msra.mxu0 0.0
    %624 = vmatprep.subr.mxu0 0.0
    %625 = vmatpush1.msra.mxu0 0.0
    %626 = vmatprep.subr.mxu0 0.0
    %627 = vmatpush1.msra.mxu0 0.0
    %628 = vmatprep.subr.mxu0 0.0
    %629 = vmatpush1.msra.mxu0 0.0
    %630 = vmatprep.subr.mxu0 0.0
    %631 = vmatpush1.msra.mxu0 0.0
    %632 = vmatprep.subr.mxu0 0.0
    %633 = vmatpush1.msra.mxu0 0.0
    %634 = vmatprep.subr.mxu0 0.0
    %635 = vmatpush1.msra.mxu0 0.0
    %636 = vmatprep.mubr.f32.mxu0 0.0
    %637 = vmatmul.mubr.f32.gmra.mrb[0].mxu0 %v540
    %v638 = vpop.f32.mrb[0].mxu0
    %v639 = vadd.f32 %v570, %v638
    %v640 = vpop.f32.mrb[0].mxu0
    %641 = vdwg.mxu0
    %v643 = vlaneseq
    %v644 = vshrl.u32 %v643, 7
    %v645 = vsub.s32 0, %v644
    %v646 = vrot.slane %v543, %v645
    %v648 = vmul.f32 %v639, %v646
    %v649 = vlaneseq
    %v650 = vand.u32 %v649, 127
    %vm651 = vcmp.lt.s32.totalorder %v650, 5
    %v652 = vsel %vm651, %v648, -1e+30
    %653 = vmax.xlane.f32.xlu0 %v652
    %v654 = vpop.xlane.xlu0 %653
    %v655 = vsub.f32 %v652, %v654
    %v656 = vmul.f32 %v655, 1.442695
    %v657 = vpow.pop %v656
    %658 = vadd.xlane.f32.xlu0 %v657
    %v659 = vpop.xlane.xlu0 %658
    %v660 = vrcp.pop %v659
    %v661 = vmul.f32 1.0, %v660
    %v662 = vmul.f32 %v657, %v661
    %663 = vst [vmem:[#allocation10] sm:$0xff] %v662
    // Predicated region
    $region70: #{q_jettagger_forward.1} parent=1 // pred_check
      _
    $region71: #{q_jettagger_forward.1} parent=1 // pred_check_branch
      %665 = sbr.rel (0) target = $region73
    $region72: #{q_jettagger_forward.1} parent=1 // pred_region
      %s667 = ssub.s32 128, 128
      %668 = vsyncadd [#allocation4], %s667
      %s670 = sshll.u32 [#allocation10], 4
      %s671 = int_to_ptr.vmem [resolvable:$true] %s670
      %673 = dma.vmem_to_hbm [thread:$0]  %s671, 128, %s13, [#allocation4]
    $region73: #{q_jettagger_forward.1} parent=1 // pred_fallthru
      _
    // Predicated region
    $region74: #{q_jettagger_forward.1} parent=1 // pred_check
      _
    $region75: #{q_jettagger_forward.1} parent=1 // pred_check_branch
      %675 = sbr.rel (0) target = $region77
    $region76: #{q_jettagger_forward.1} parent=1 // pred_region
      %676 = dma.done [#allocation4], 128
    $region77: #{q_jettagger_forward.1} parent=1 // pred_fallthru
      _
    %677 = vsyncpa [#allocation3], 1
    %678 = vsyncpa [#allocation6], 1
    %679 = vsyncpa [#allocation9], 1
    %680 = vsyncpa [#allocation4], 1

</llo_original>
